<compile_context>
chip_gen: v6e
topology: v6e:2x2x1
jax: 0.10.0
libtpu: 0.0.40
codegen_flags: <defaults>
</compile_context>

<pallas_src>
import jax
import jax.numpy as jnp
from jax.experimental import pallas as pl
from jax.experimental.pallas import tpu as pltpu

# ---- static model dims (num_nodes=16, input_dim=16, hidden_channels=8, classes=2)
N_NODES = 16
IN_DIM = 16
HID = 8
HID2 = HID // 2
NUM_CLASSES = 2
GIN_EPS = 0.0          # GINConv default (train_eps=False)
BN_EPS = 1e-5

LANES = 128
# packed-parameter slab row layout (single lane-padded [P_ROWS, 128] f32 input)
ROW_W1 = 0                       # rows [0, 16)   cols [0, HID)        : w1 * s1
ROW_W2 = ROW_W1 + IN_DIM         # rows [16, 24)  cols [0, HID2)       : w2 * s2
ROW_FCW = ROW_W2 + HID           # rows [24, 28)  cols [0, NUM_CLASSES): fc_w
ROW_T1 = ROW_FCW + HID2          # row 28         cols [0, HID)        : b1*s1 + shift1
ROW_T2 = ROW_T1 + 1              # row 29         cols [0, HID2)       : b2*s2 + shift2
ROW_FCB = ROW_T2 + 1             # row 30         cols [0, NUM_CLASSES): fc_b
P_ROWS = 32

# packed-output slab row layout (lane-dense [OUT_ROWS, 128] f32 per graph)
OUT_ROWS = ((N_NODES + 2 + 7) // 8) * 8   # 24: rows 0..15 n_reps, 16 g_rep, 17 probs


# --------------------------- fused forward kernel ----------------------------
def _gin_forward_kernel(x_ref, a_ref, p_ref, out_ref):
    x = x_ref[...]                                                       # [N, F]
    a_hat = a_ref[...]                                                   # [N, N] = A + (1+eps) I

    # static slices of the packed parameter slab (no runtime cost)
    w1 = p_ref[ROW_W1:ROW_W1 + IN_DIM, 0:HID]                            # [F, H]  (BN-folded)
    w2 = p_ref[ROW_W2:ROW_W2 + HID, 0:HID2]                              # [H, H/2] (BN-folded)
    fcw = p_ref[ROW_FCW:ROW_FCW + HID2, 0:NUM_CLASSES]                   # [H/2, C]
    t1 = p_ref[ROW_T1:ROW_T1 + 1, 0:HID]                                 # [1, H]
    t2 = p_ref[ROW_T2:ROW_T2 + 1, 0:HID2]                                # [1, H/2]
    fcb = p_ref[ROW_FCB:ROW_FCB + 1, 0:NUM_CLASSES]                      # [1, C]

    # ---- conv1: GIN sum-aggregation, then folded MLP (Linear+BN(eval)) + ReLU
    agg1 = jnp.dot(a_hat, x, preferred_element_type=jnp.float32)         # [N, F]
    h1 = jnp.maximum(
        jnp.dot(agg1, w1, preferred_element_type=jnp.float32) + t1, 0.0)  # [N, H]

    # ---- conv2
    agg2 = jnp.dot(a_hat, h1, preferred_element_type=jnp.float32)        # [N, H]
    n_reps = jnp.maximum(
        jnp.dot(agg2, w2, preferred_element_type=jnp.float32) + t2, 0.0)  # [N, H/2]

    # ---- readout: mean over nodes (sum * 1/N), fc, softmax
    g = jnp.sum(n_reps, axis=0, keepdims=True) * (1.0 / N_NODES)         # [1, H/2]
    # F.dropout(p=0.5) on g_rep: identity in eval mode.
    logits = jnp.dot(g, fcw, preferred_element_type=jnp.float32) + fcb   # [1, C]
    m = jnp.max(logits, axis=-1, keepdims=True)
    e = jnp.exp(logits - m)
    probs = e / jnp.sum(e, axis=-1, keepdims=True)                       # softmax(dim=1)

    # ---- single packed output slab: one dense HBM writeback per graph
    out_ref[...] = jnp.zeros((OUT_ROWS, LANES), jnp.float32)
    out_ref[0:N_NODES, 0:HID2] = n_reps
    out_ref[N_NODES:N_NODES + 1, 0:HID2] = g
    out_ref[N_NODES + 1:N_NODES + 2, 0:NUM_CLASSES] = probs


def gmapad_gin_forward(x_b, a_hat_b, param_slab):
    """Batched GmapAD_GIN forward. x_b: [B,N,F], a_hat_b: [B,N,N], param_slab: [32,128].

    Returns (probs [B,1,C], n_reps [B,N,H/2], g_rep [B,1,H/2])."""
    B = x_b.shape[0]
    out = pl.pallas_call(
        _gin_forward_kernel,
        out_shape=jax.ShapeDtypeStruct((B, OUT_ROWS, LANES), jnp.float32),
        grid=(B,),
        in_specs=[
            pl.BlockSpec((None, N_NODES, IN_DIM), lambda b: (b, 0, 0)),
            pl.BlockSpec((None, N_NODES, N_NODES), lambda b: (b, 0, 0)),
            pl.BlockSpec((P_ROWS, LANES), lambda b: (0, 0)),   # params resident
        ],
        out_specs=pl.BlockSpec((None, OUT_ROWS, LANES), lambda b: (b, 0, 0)),
        compiler_params=pltpu.CompilerParams(
            dimension_semantics=("parallel",)),    # shards batch across TCs on v7x
    )(x_b, a_hat_b, param_slab)

    n_reps = out[:, :N_NODES, :HID2]
    g_rep = out[:, N_NODES:N_NODES + 1, :HID2]
    probs = out[:, N_NODES + 1:N_NODES + 2, :NUM_CLASSES]
    return probs, n_reps, g_rep


# ----------------------------- pure-JAX reference ----------------------------
def _forward_ref_single(x, a_hat, raw):
    h1 = jax.nn.relu((a_hat @ x @ raw["w1"] + raw["b1"]) * raw["s1"] + raw["t1"])
    h2 = (a_hat @ h1 @ raw["w2"] + raw["b2"]) * raw["s2"] + raw["t2"]
    n_reps = jax.nn.relu(h2)
    g_rep = jnp.mean(n_reps, axis=0, keepdims=True)
    probs = jax.nn.softmax(g_rep @ raw["fc_w"] + raw["fc_b"], axis=1)
    return probs, n_reps, g_rep


# ------------------------------------ main ------------------------------------
if __name__ == "__main__":
    B = 8          # graphs per call (batch axis is the parallel grid dimension)
    E = 48         # edges per graph

    key = jax.random.PRNGKey(0)
    keys = jax.random.split(key, 18)

    # node features per graph
    x_b = jax.random.normal(keys[0], (B, N_NODES, IN_DIM), dtype=jnp.float32)

    # random directed edge_index per graph -> dense A[dst, src] += 1 (duplicates count),
    # then A_hat = A + (1+eps) I so each GIN aggregation is one matmul.
    src = jax.random.randint(keys[1], (B, E), 0, N_NODES)
    dst = jax.random.randint(keys[2], (B, E), 0, N_NODES)
    adj = jnp.zeros((B, N_NODES, N_NODES), jnp.float32).at[
        jnp.arange(B)[:, None], dst, src].add(1.0)
    a_hat_b = adj + (1.0 + GIN_EPS) * jnp.eye(N_NODES, dtype=jnp.float32)[None]

    def init(k, shape, scale=0.1):
        return scale * jax.random.normal(k, shape, dtype=jnp.float32)

    # Eval-mode BatchNorm1d running stats -> per-channel scale/shift.
    def bn_fold(kg, kb, km, kv, ch):
        gamma = 1.0 + init(kg, (1, ch))
        beta = init(kb, (1, ch))
        mean = init(km, (1, ch))
        var = jnp.abs(init(kv, (1, ch))) + 0.5
        scale = gamma / jnp.sqrt(var + BN_EPS)
        shift = beta - mean * scale
        return scale, shift

    s1, t1 = bn_fold(keys[3], keys[4], keys[5], keys[6], HID)
    s2, t2 = bn_fold(keys[7], keys[8], keys[9], keys[10], HID2)

    raw = dict(
        w1=init(keys[11], (IN_DIM, HID)), b1=init(keys[12], (1, HID)),
        s1=s1, t1=t1,
        w2=init(keys[13], (HID, HID2)), b2=init(keys[14], (1, HID2)),
        s2=s2, t2=t2,
        fc_w=init(keys[15], (HID2, NUM_CLASSES)),
        fc_b=jnp.zeros((1, NUM_CLASSES), jnp.float32),
    )

    # ---- host-side folding: Linear bias + eval-BN into weights/shifts
    w1_f = raw["w1"] * raw["s1"]                 # per-output-column scale
    t1_f = raw["b1"] * raw["s1"] + raw["t1"]
    w2_f = raw["w2"] * raw["s2"]
    t2_f = raw["b2"] * raw["s2"] + raw["t2"]

    # ---- pack all params into one lane-padded slab -> single parameter DMA
    slab = jnp.zeros((P_ROWS, LANES), jnp.float32)
    slab = slab.at[ROW_W1:ROW_W1 + IN_DIM, 0:HID].set(w1_f)
    slab = slab.at[ROW_W2:ROW_W2 + HID, 0:HID2].set(w2_f)
    slab = slab.at[ROW_FCW:ROW_FCW + HID2, 0:NUM_CLASSES].set(raw["fc_w"])
    slab = slab.at[ROW_T1, 0:HID].set(t1_f[0])
    slab = slab.at[ROW_T2, 0:HID2].set(t2_f[0])
    slab = slab.at[ROW_FCB, 0:NUM_CLASSES].set(raw["fc_b"][0])

    probs, n_reps, g_rep = gmapad_gin_forward(x_b, a_hat_b, slab)
    jax.block_until_ready((probs, n_reps, g_rep))

    # correctness check against a pure-JAX reference (unfolded params)
    p_ref, n_ref, g_ref = jax.vmap(
        lambda xg, ag: _forward_ref_single(xg, ag, raw))(x_b, a_hat_b)

    assert probs.shape == (B, 1, NUM_CLASSES)
    assert n_reps.shape == (B, N_NODES, HID2)
    assert g_rep.shape == (B, 1, HID2)
    assert jnp.allclose(probs, p_ref, atol=1e-4, rtol=1e-4)
    assert jnp.allclose(n_reps, n_ref, atol=1e-4, rtol=1e-4)
    assert jnp.allclose(g_rep, g_ref, atol=1e-4, rtol=1e-4)

    print("KERNEL_OK")
</pallas_src>

<mosaic_0001>
module attributes {stable_mosaic.version = 11 : i64} {
  func.func @_gin_forward_kernel(%arg0: i32, %arg1: memref<1x16x16xf32, #tpu.memory_space<vmem>>, %arg2: memref<1x16x16xf32, #tpu.memory_space<vmem>>, %arg3: memref<32x128xf32, #tpu.memory_space<vmem>>, %arg4: memref<1x24x128xf32, #tpu.memory_space<vmem>>) attributes {dimension_semantics = [#tpu.dimension_semantics<parallel>], iteration_bounds = array<i64: 8>, scalar_prefetch = 0 : i64, scratch_operands = 0 : i64, tpu.core_type = #tpu.core_type<tc>, window_params = [{transform_indices = @transform_0, window_bounds = array<i64: 1, 16, 16>}, {transform_indices = @transform_1, window_bounds = array<i64: 1, 16, 16>}, {pipeline_mode = #tpu.pipeline_mode<synchronous>, transform_indices = @transform_2, window_bounds = array<i64: 32, 128>}, {transform_indices = @transform_3, window_bounds = array<i64: 1, 24, 128>}]} {
    %c0 = arith.constant 0 : index
    %c0_0 = arith.constant 0 : index
    %c0_1 = arith.constant 0 : index
    %0 = vector.load %arg1[%c0, %c0_0, %c0_1] : memref<1x16x16xf32, #tpu.memory_space<vmem>>, vector<1x16x16xf32>
    %1 = vector.shape_cast %0 : vector<1x16x16xf32> to vector<16x16xf32>
    %c0_2 = arith.constant 0 : index
    %c0_3 = arith.constant 0 : index
    %c0_4 = arith.constant 0 : index
    %2 = vector.load %arg2[%c0_2, %c0_3, %c0_4] : memref<1x16x16xf32, #tpu.memory_space<vmem>>, vector<1x16x16xf32>
    %3 = vector.shape_cast %2 : vector<1x16x16xf32> to vector<16x16xf32>
    %c0_5 = arith.constant 0 : index
    %c0_6 = arith.constant 0 : index
    %4 = vector.load %arg3[%c0_5, %c0_6] : memref<32x128xf32, #tpu.memory_space<vmem>>, vector<16x8xf32>
    %c16 = arith.constant 16 : index
    %c0_7 = arith.constant 0 : index
    %5 = vector.load %arg3[%c16, %c0_7] : memref<32x128xf32, #tpu.memory_space<vmem>>, vector<8x4xf32>
    %c24 = arith.constant 24 : index
    %c0_8 = arith.constant 0 : index
    %6 = vector.load %arg3[%c24, %c0_8] : memref<32x128xf32, #tpu.memory_space<vmem>>, vector<4x2xf32>
    %c28 = arith.constant 28 : index
    %c0_9 = arith.constant 0 : index
    %7 = vector.load %arg3[%c28, %c0_9] : memref<32x128xf32, #tpu.memory_space<vmem>>, vector<1x8xf32>
    %c29 = arith.constant 29 : index
    %c0_10 = arith.constant 0 : index
    %8 = vector.load %arg3[%c29, %c0_10] : memref<32x128xf32, #tpu.memory_space<vmem>>, vector<1x4xf32>
    %c30 = arith.constant 30 : index
    %c0_11 = arith.constant 0 : index
    %9 = vector.load %arg3[%c30, %c0_11] : memref<32x128xf32, #tpu.memory_space<vmem>>, vector<1x2xf32>
    %cst = arith.constant dense<0.000000e+00> : vector<16x16xf32>
    %10 = tpu.matmul %3, %1, %cst {dimension_numbers = #tpu.dot_dimension_numbers<[1], [0], [0], [1], [0, 0, 1, 1], [], []>} : vector<16x16xf32>, vector<16x16xf32>, vector<16x16xf32> -> vector<16x16xf32>
    %cst_12 = arith.constant dense<0.000000e+00> : vector<16x8xf32>
    %11 = tpu.matmul %10, %4, %cst_12 {dimension_numbers = #tpu.dot_dimension_numbers<[1], [0], [0], [1], [0, 0, 1, 1], [], []>} : vector<16x16xf32>, vector<16x8xf32>, vector<16x8xf32> -> vector<16x8xf32>
    %12 = vector.broadcast %7 : vector<1x8xf32> to vector<16x8xf32>
    %13 = arith.addf %11, %12 : vector<16x8xf32>
    %cst_13 = arith.constant 0.000000e+00 : f32
    %14 = vector.broadcast %cst_13 : f32 to vector<16x8xf32>
    %15 = arith.maximumf %13, %14 : vector<16x8xf32>
    %cst_14 = arith.constant dense<0.000000e+00> : vector<16x8xf32>
    %16 = tpu.matmul %3, %15, %cst_14 {dimension_numbers = #tpu.dot_dimension_numbers<[1], [0], [0], [1], [0, 0, 1, 1], [], []>} : vector<16x16xf32>, vector<16x8xf32>, vector<16x8xf32> -> vector<16x8xf32>
    %cst_15 = arith.constant dense<0.000000e+00> : vector<16x4xf32>
    %17 = tpu.matmul %16, %5, %cst_15 {dimension_numbers = #tpu.dot_dimension_numbers<[1], [0], [0], [1], [0, 0, 1, 1], [], []>} : vector<16x8xf32>, vector<8x4xf32>, vector<16x4xf32> -> vector<16x4xf32>
    %18 = vector.broadcast %8 : vector<1x4xf32> to vector<16x4xf32>
    %19 = arith.addf %17, %18 : vector<16x4xf32>
    %cst_16 = arith.constant 0.000000e+00 : f32
    %20 = vector.broadcast %cst_16 : f32 to vector<16x4xf32>
    %21 = arith.maximumf %19, %20 : vector<16x4xf32>
    %cst_17 = arith.constant dense<0.000000e+00> : vector<4xf32>
    %22 = vector.multi_reduction <add>, %21, %cst_17 [0] : vector<16x4xf32> to vector<4xf32>
    %23 = vector.shape_cast %22 : vector<4xf32> to vector<1x4xf32>
    %cst_18 = arith.constant 6.250000e-02 : f32
    %24 = vector.broadcast %cst_18 : f32 to vector<1x4xf32>
    %25 = arith.mulf %23, %24 : vector<1x4xf32>
    %cst_19 = arith.constant dense<0.000000e+00> : vector<1x2xf32>
    %26 = tpu.matmul %25, %6, %cst_19 {dimension_numbers = #tpu.dot_dimension_numbers<[1], [0], [0], [1], [0, 0, 1, 1], [], []>} : vector<1x4xf32>, vector<4x2xf32>, vector<1x2xf32> -> vector<1x2xf32>
    %27 = arith.addf %26, %9 : vector<1x2xf32>
    %cst_20 = arith.constant dense<0xFF800000> : vector<1xf32>
    %28 = vector.multi_reduction <maximumf>, %27, %cst_20 [1] : vector<1x2xf32> to vector<1xf32>
    %29 = vector.shape_cast %28 : vector<1xf32> to vector<1x1xf32>
    %30 = vector.broadcast %29 : vector<1x1xf32> to vector<1x2xf32>
    %31 = arith.subf %27, %30 : vector<1x2xf32>
    %32 = math.exp %31 : vector<1x2xf32>
    %cst_21 = arith.constant dense<0.000000e+00> : vector<1xf32>
    %33 = vector.multi_reduction <add>, %32, %cst_21 [1] : vector<1x2xf32> to vector<1xf32>
    %34 = vector.shape_cast %33 : vector<1xf32> to vector<1x1xf32>
    %35 = vector.broadcast %34 : vector<1x1xf32> to vector<1x2xf32>
    %36 = arith.divf %32, %35 : vector<1x2xf32>
    %cst_22 = arith.constant 0.000000e+00 : f32
    %37 = vector.broadcast %cst_22 : f32 to vector<24x128xf32>
    %c0_23 = arith.constant 0 : index
    %c0_24 = arith.constant 0 : index
    %c0_25 = arith.constant 0 : index
    %38 = vector.load %arg4[%c0_23, %c0_24, %c0_25] : memref<1x24x128xf32, #tpu.memory_space<vmem>>, vector<1x24x128xf32>
    %39 = vector.shape_cast %38 : vector<1x24x128xf32> to vector<24x128xf32>
    %40 = vector.shape_cast %37 : vector<24x128xf32> to vector<1x24x128xf32>
    tpu.vector_store %arg4[%c0_23, %c0_24, %c0_25], %40 {strides = array<i32>} : memref<1x24x128xf32, #tpu.memory_space<vmem>>, vector<1x24x128xf32>,
    %c0_26 = arith.constant 0 : index
    %c0_27 = arith.constant 0 : index
    %c0_28 = arith.constant 0 : index
    %41 = vector.load %arg4[%c0_26, %c0_27, %c0_28] : memref<1x24x128xf32, #tpu.memory_space<vmem>>, vector<1x16x4xf32>
    %42 = vector.shape_cast %41 : vector<1x16x4xf32> to vector<16x4xf32>
    %43 = vector.shape_cast %21 : vector<16x4xf32> to vector<1x16x4xf32>
    tpu.vector_store %arg4[%c0_26, %c0_27, %c0_28], %43 {strides = array<i32>} : memref<1x24x128xf32, #tpu.memory_space<vmem>>, vector<1x16x4xf32>,
    %c0_29 = arith.constant 0 : index
    %c16_30 = arith.constant 16 : index
    %c0_31 = arith.constant 0 : index
    %44 = vector.load %arg4[%c0_29, %c16_30, %c0_31] : memref<1x24x128xf32, #tpu.memory_space<vmem>>, vector<1x1x4xf32>
    %45 = vector.shape_cast %44 : vector<1x1x4xf32> to vector<1x4xf32>
    %46 = vector.shape_cast %25 : vector<1x4xf32> to vector<1x1x4xf32>
    tpu.vector_store %arg4[%c0_29, %c16_30, %c0_31], %46 {strides = array<i32>} : memref<1x24x128xf32, #tpu.memory_space<vmem>>, vector<1x1x4xf32>,
    %c0_32 = arith.constant 0 : index
    %c17 = arith.constant 17 : index
    %c0_33 = arith.constant 0 : index
    %47 = vector.load %arg4[%c0_32, %c17, %c0_33] : memref<1x24x128xf32, #tpu.memory_space<vmem>>, vector<1x1x2xf32>
    %48 = vector.shape_cast %47 : vector<1x1x2xf32> to vector<1x2xf32>
    %49 = vector.shape_cast %36 : vector<1x2xf32> to vector<1x1x2xf32>
    tpu.vector_store %arg4[%c0_32, %c17, %c0_33], %49 {strides = array<i32>} : memref<1x24x128xf32, #tpu.memory_space<vmem>>, vector<1x1x2xf32>,
    return
  }
  func.func @transform_0(%arg0: i32) -> (i32, i32, i32) {
    %c0_i32 = arith.constant 0 : i32
    %c0_i32_0 = arith.constant 0 : i32
    %c0_i32_1 = arith.constant 0 : i32
    return %arg0, %c0_i32, %c0_i32_0 : i32, i32, i32
  }
  func.func @transform_1(%arg0: i32) -> (i32, i32, i32) {
    %c0_i32 = arith.constant 0 : i32
    %c0_i32_0 = arith.constant 0 : i32
    %c0_i32_1 = arith.constant 0 : i32
    return %arg0, %c0_i32, %c0_i32_0 : i32, i32, i32
  }
  func.func @transform_2(%arg0: i32) -> (i32, i32) {
    %c0_i32 = arith.constant 0 : i32
    %c0_i32_0 = arith.constant 0 : i32
    %c0_i32_1 = arith.constant 0 : i32
    return %c0_i32, %c0_i32_0 : i32, i32
  }
  func.func @transform_3(%arg0: i32) -> (i32, i32, i32) {
    %c0_i32 = arith.constant 0 : i32
    %c0_i32_0 = arith.constant 0 : i32
    %c0_i32_1 = arith.constant 0 : i32
    return %arg0, %c0_i32, %c0_i32_0 : i32, i32, i32
  }
}

</mosaic_0001>

<llo_original>
// kernel: tpu_custom_call.1
$region0: #{tpu_custom_call.1}
  #allocation0 [shape = 'u32[]', space=smem, size = 0x4, offset = 0x4, fixed_abs, tag = 'smem constant byte address 0x4 - core index']
  #allocation1 [shape = 'u32[144,128]{1,0:T(1,128)}', space=vmem, size = 0x12000, scoped, tag = 'internal scratch']
  %s0 = inlined_call_operand.hbm [shape: f32[8,16,16], index: 0, kind: input, shape index: {}]
  %s1 = inlined_call_operand.hbm [shape: f32[8,16,16], index: 1, kind: input, shape index: {}]
  %s2 = inlined_call_operand.hbm [shape: f32[32,128], index: 2, kind: input, shape index: {}]
  %s3 = inlined_call_operand.hbm [shape: f32[8,24,128], index: 3, kind: output, shape index: {}]
  %s4 = sld [smem:[#allocation0]]
  $region57: #{tpu_custom_call.1} parent=0
    _
  %s6 = ssub.s32 1, %s4
  %s7 = scalar_select 0, %s6, %s4
  $region1: #{tpu_custom_call.1} parent=0
    #allocation2 [shape = 'u8[16384]{0}', space=vmem, size = 0x4000, scoped, tag = 'input window, operand 0']
    #allocation3 [shape = 's32[2]{0}', space=sflag, size = 0x8, scoped, tag = 'scoped memory for tpu_custom_call.1']
    #allocation4 [shape = 's32[2]{0}', space=sflag, size = 0x8, scoped, tag = 'scoped memory for tpu_custom_call.1']
    #allocation5 [shape = 'u8[16384]{0}', space=vmem, size = 0x4000, scoped, tag = 'input window, operand 1']
    #allocation6 [shape = 's32[2]{0}', space=sflag, size = 0x8, scoped, tag = 'scoped memory for tpu_custom_call.1']
    #allocation7 [shape = 'u8[16384]{0}', space=vmem, size = 0x4000, scoped, tag = 'input window, operand 2, single buffered']
    #allocation8 [shape = 'u8[24576]{0}', space=vmem, size = 0x6000, scoped, tag = 'output window, operand 0']
    %8 = vsyncpa [#allocation3], 0
    %s9 = scalar_lea.sflag [#allocation3], 1
    %10 = vsyncpa %s9, 0
    %11 = vsyncpa [#allocation6], 0
    %s12 = scalar_lea.sflag [#allocation6], 1
    %13 = vsyncpa %s12, 0
    %14 = vsyncpa [#allocation4], 0
    %s15 = scalar_lea.sflag [#allocation4], 1
    %16 = vsyncpa %s15, 0
    loop: start=0, step=1, limit=10
    $region2: #{tpu_custom_call.1} parent=1 // loop_pre_header
      _
    $region3: #{tpu_custom_call.1} parent=1 // loop_header
      %s18 = sphi 0, %s22
      %p19 = scmp.ge.s32.totalorder %s18, 10
      %s28 = sphi 0, %s30
      %s31 = sphi 0, %s28
      %s32 = sphi 0, %s31
      %s48 = sphi 0, %s32
      %s54 = sphi 0, %s56
      %s57 = sphi 0, %s54
      %s58 = sphi 0, %s57
      %s74 = sphi 0, %s58
      %s78 = sphi 0, %s78
      %s80 = sphi 0, %s78
      %s81 = sphi 0, %s80
      %s95 = sphi 0, %s81
      %s101 = sphi 0, %s103
      %s104 = sphi 0, %s101
      %s105 = sphi 0, %s104
      %s121 = sphi 0, %s105
    $region4: #{tpu_custom_call.1} parent=1 // loop_header_branch
      %21 = sbr.rel (%p19) target = $region8
    $region5: #{tpu_custom_call.1} parent=1 // loop_body
      %s23 = ssub.s32 %s18, 1
      %s24 = ssub.s32 %s18, 2
      %s25 = sadd.s32 %s18, 1
      %s26 = ssub.s32 %s18, %s25
      %p27 = scmp.eq.s32.totalorder %s26, 0
      %s29 = sadd.s32 %s28, 1
      %s30 = scalar_select %p27, %s28, %s29
      %p33 = pneg %p27
      %p34 = scmp.eq.s32.totalorder %s18, 7
      %p35 = por %p33, %p34
      %p36 = scmp.ne.s32.totalorder %s28, %s31
      %p37 = scmp.eq.s32.totalorder %s18, 0
      %p38 = por %p36, %p37
      %p39 = scmp.ne.s32.totalorder %s28, %s31
      %p40 = scmp.eq.s32.totalorder %s23, 7
      %p41 = por %p39, %p40
      %p42 = scmp.ne.s32.totalorder %s31, %s32
      %p43 = scmp.eq.s32.totalorder %s23, 0
      %p44 = por %p42, %p43
      %p45 = scmp.ne.s32.totalorder %s31, %s32
      %p46 = scmp.eq.s32.totalorder %s24, 7
      %p47 = por %p45, %p46
      %p49 = scmp.ne.s32.totalorder %s32, %s48
      %p50 = scmp.eq.s32.totalorder %s24, 0
      %p51 = por %p49, %p50
      %s52 = ssub.s32 %s18, %s25
      %p53 = scmp.eq.s32.totalorder %s52, 0
      %s55 = sadd.s32 %s54, 1
      %s56 = scalar_select %p53, %s54, %s55
      %p59 = pneg %p53
      %p60 = scmp.eq.s32.totalorder %s18, 7
      %p61 = por %p59, %p60
      %p62 = scmp.ne.s32.totalorder %s54, %s57
      %p63 = scmp.eq.s32.totalorder %s18, 0
      %p64 = por %p62, %p63
      %p65 = scmp.ne.s32.totalorder %s54, %s57
      %p66 = scmp.eq.s32.totalorder %s23, 7
      %p67 = por %p65, %p66
      %p68 = scmp.ne.s32.totalorder %s57, %s58
      %p69 = scmp.eq.s32.totalorder %s23, 0
      %p70 = por %p68, %p69
      %p71 = scmp.ne.s32.totalorder %s57, %s58
      %p72 = scmp.eq.s32.totalorder %s24, 7
      %p73 = por %p71, %p72
      %p75 = scmp.ne.s32.totalorder %s58, %s74
      %p76 = scmp.eq.s32.totalorder %s24, 0
      %p77 = por %p75, %p76
      %s79 = sadd.s32 %s78, 1
      %p82 = scmp.eq.s32.totalorder %s18, 7
      %p83 = scmp.ne.s32.totalorder %s78, %s80
      %p84 = scmp.eq.s32.totalorder %s18, 0
      %p85 = por %p83, %p84
      %p86 = scmp.ne.s32.totalorder %s78, %s80
      %p87 = scmp.eq.s32.totalorder %s23, 7
      %p88 = por %p86, %p87
      %p89 = scmp.ne.s32.totalorder %s80, %s81
      %p90 = scmp.eq.s32.totalorder %s23, 0
      %p91 = por %p89, %p90
      %p92 = scmp.ne.s32.totalorder %s80, %s81
      %p93 = scmp.eq.s32.totalorder %s24, 7
      %p94 = por %p92, %p93
      %p96 = scmp.ne.s32.totalorder %s81, %s95
      %p97 = scmp.eq.s32.totalorder %s24, 0
      %p98 = por %p96, %p97
      %s99 = ssub.s32 %s18, %s25
      %p100 = scmp.eq.s32.totalorder %s99, 0
      %s102 = sadd.s32 %s101, 1
      %s103 = scalar_select %p100, %s101, %s102
      %p106 = pneg %p100
      %p107 = scmp.eq.s32.totalorder %s18, 7
      %p108 = por %p106, %p107
      %p109 = scmp.ne.s32.totalorder %s101, %s104
      %p110 = scmp.eq.s32.totalorder %s18, 0
      %p111 = por %p109, %p110
      %p112 = scmp.ne.s32.totalorder %s101, %s104
      %p113 = scmp.eq.s32.totalorder %s23, 7
      %p114 = por %p112, %p113
      %p115 = scmp.ne.s32.totalorder %s104, %s105
      %p116 = scmp.eq.s32.totalorder %s23, 0
      %p117 = por %p115, %p116
      %p118 = scmp.ne.s32.totalorder %s104, %s105
      %p119 = scmp.eq.s32.totalorder %s24, 7
      %p120 = por %p118, %p119
      %p122 = scmp.ne.s32.totalorder %s105, %s121
      %p123 = scmp.eq.s32.totalorder %s24, 0
      %p124 = por %p122, %p123
      %p125 = scmp.le.s32.totalorder 1, %s18
      %p126 = scmp.lt.s32.totalorder %s18, 9
      %p127 = pnand %p125, %p126
      %p128 = pneg %p127
      // Predicated region
      $region9: #{tpu_custom_call.1} parent=5 // pred_check
        _
      $region10: #{tpu_custom_call.1} parent=5 // pred_check_branch
        %130 = sbr.rel (%p127) target = $region12
      $region11: #{tpu_custom_call.1} parent=5 // pred_region
        %s131 = ssub.s32 %s18, 1
        // Predicated region
        $region13: #{tpu_custom_call.1} parent=11 // pred_check
          %p132 = pneg %p91
        $region14: #{tpu_custom_call.1} parent=11 // pred_check_branch
          %134 = sbr.rel (%p132) target = $region16
        $region15: #{tpu_custom_call.1} parent=11 // pred_region
          %s136 = ssub.s32 512, 512
          %137 = vsyncadd [#allocation6], %s136
          %s138 = sshll.u32 [#allocation7], 4
          %s139 = int_to_ptr.vmem [resolvable:$true] %s138
          %144 = dma.hbm_to_vmem [thread:$0]  %s2, 512, %s139, [#allocation6], 128, 128, 8
        $region16: #{tpu_custom_call.1} parent=11 // pred_fallthru
          _
      $region12: #{tpu_custom_call.1} parent=5 // pred_fallthru
        _
      %p145 = scmp.lt.s32.totalorder %s18, 8
      // Predicated region
      $region17: #{tpu_custom_call.1} parent=5 // pred_check
        %p146 = pneg %p145
      $region18: #{tpu_custom_call.1} parent=5 // pred_check_branch
        %148 = sbr.rel (%p146) target = $region20
      $region19: #{tpu_custom_call.1} parent=5 // pred_region
        // Predicated region
        $region21: #{tpu_custom_call.1} parent=19 // pred_check
          %p149 = pneg %p38
        $region22: #{tpu_custom_call.1} parent=19 // pred_check_branch
          %151 = sbr.rel (%p149) target = $region24
        $region23: #{tpu_custom_call.1} parent=19 // pred_region
          %s152 = sand.u32 %s28, 1
          %s153 = scalar_lea.sflag [#allocation3], %s152
          %s154 = sand.u32 %s28, 1
          %s155 = smul.addr %s154, 16
          %s156 = scalar_lea.vmem [#allocation2], %s155
          %s158 = ssub.s32 256, 256
          %159 = vsyncadd %s153, %s158
          %s160 = smul.addr %s18, 2
          %s161 = smul.addr %s160, 128
          %s162 = scalar_lea.hbm %s0, %s161
          %s163 = sshll.u32 %s156, 4
          %s164 = int_to_ptr.vmem [resolvable:$true] %s163
          %169 = dma.hbm_to_vmem [thread:$0]  %s162, 256, %s164, %s153, 128, 128, 8
        $region24: #{tpu_custom_call.1} parent=19 // pred_fallthru
          _
        // Predicated region
        $region25: #{tpu_custom_call.1} parent=19 // pred_check
          %p170 = pneg %p64
        $region26: #{tpu_custom_call.1} parent=19 // pred_check_branch
          %172 = sbr.rel (%p170) target = $region28
        $region27: #{tpu_custom_call.1} parent=19 // pred_region
          %s173 = sand.u32 %s18, 1
          %s174 = scalar_lea.sflag [#allocation6], %s173
          %s175 = sand.u32 %s54, 1
          %s176 = smul.addr %s175, 16
          %s177 = scalar_lea.vmem [#allocation5], %s176
          %s179 = ssub.s32 256, 256
          %180 = vsyncadd %s174, %s179
          %s181 = smul.addr %s18, 2
          %s182 = smul.addr %s181, 128
          %s183 = scalar_lea.hbm %s1, %s182
          %s184 = sshll.u32 %s177, 4
          %s185 = int_to_ptr.vmem [resolvable:$true] %s184
          %190 = dma.hbm_to_vmem [thread:$0]  %s183, 256, %s185, %s174, 128, 128, 8
        $region28: #{tpu_custom_call.1} parent=19 // pred_fallthru
          _
      $region20: #{tpu_custom_call.1} parent=5 // pred_fallthru
        _
      %p191 = scmp.le.s32.totalorder 1, %s18
      %p192 = scmp.lt.s32.totalorder %s18, 9
      %p193 = pnand %p191, %p192
      %p194 = pneg %p193
      // Predicated region
      $region29: #{tpu_custom_call.1} parent=5 // pred_check
        _
      $region30: #{tpu_custom_call.1} parent=5 // pred_check_branch
        %196 = sbr.rel (%p193) target = $region32
      $region31: #{tpu_custom_call.1} parent=5 // pred_region
        %s197 = ssub.s32 %s18, 1
        %s198 = sand.u32 %s31, 1
        %s199 = scalar_lea.sflag [#allocation3], %s198
        %s200 = sand.u32 %s31, 1
        %s201 = smul.addr %s200, 16
        %s202 = scalar_lea.vmem [#allocation2], %s201
        // Predicated region
        $region33: #{tpu_custom_call.1} parent=31 // pred_check
          %p203 = pneg %p44
        $region34: #{tpu_custom_call.1} parent=31 // pred_check_branch
          %205 = sbr.rel (%p203) target = $region36
        $region35: #{tpu_custom_call.1} parent=31 // pred_region
          %206 = dma.done %s199, 256
        $region36: #{tpu_custom_call.1} parent=31 // pred_fallthru
          _
        %s207 = sand.u32 %s23, 1
        %s208 = scalar_lea.sflag [#allocation6], %s207
        %s209 = sand.u32 %s57, 1
        %s210 = smul.addr %s209, 16
        %s211 = scalar_lea.vmem [#allocation5], %s210
        // Predicated region
        $region37: #{tpu_custom_call.1} parent=31 // pred_check
          %p212 = pneg %p70
        $region38: #{tpu_custom_call.1} parent=31 // pred_check_branch
          %214 = sbr.rel (%p212) target = $region40
        $region39: #{tpu_custom_call.1} parent=31 // pred_region
          %215 = dma.done %s208, 256
        $region40: #{tpu_custom_call.1} parent=31 // pred_fallthru
          _
        // Predicated region
        $region41: #{tpu_custom_call.1} parent=31 // pred_check
          %p216 = pneg %p91
        $region42: #{tpu_custom_call.1} parent=31 // pred_check_branch
          %218 = sbr.rel (%p216) target = $region44
        $region43: #{tpu_custom_call.1} parent=31 // pred_region
          %219 = dma.done [#allocation6], 512
        $region44: #{tpu_custom_call.1} parent=31 // pred_fallthru
          _
        %s220 = sand.u32 %s31, 1
        %s221 = scalar_lea.sflag [#allocation3], %s220
        %s222 = sand.u32 %s31, 1
        %s223 = smul.addr %s222, 16
        %s224 = scalar_lea.vmem [#allocation2], %s223
        %p225 = pneg %p44
        %p226 = pneg %p41
        %s227 = sand.u32 %s23, 1
        %s228 = scalar_lea.sflag [#allocation6], %s227
        %s229 = sand.u32 %s57, 1
        %s230 = smul.addr %s229, 16
        %s231 = scalar_lea.vmem [#allocation5], %s230
        %p232 = pneg %p70
        %p233 = pneg %p67
        %p234 = pneg %p91
        %p235 = pneg %p88
        %p236 = pneg %p117
        %p237 = pneg %p114
        %s238 = sand.u32 %s104, 1
        %s239 = scalar_lea.sflag [#allocation4], %s238
        %s240 = sand.u32 %s104, 1
        %s241 = smul.addr %s240, 24
        %s242 = scalar_lea.vmem [#allocation8], %s241
        %v243 = vld [vmem:[%s202] sm:$0xff]
        %v244 = vld [vmem:[%s202 + $0x8] sm:$0xff]
        %v245 = vld [vmem:[%s211] sm:$0xff]
        %v246 = vld [vmem:[%s211 + $0x8] sm:$0xff]
        %v247 = vld [vmem:[#allocation7] sm:$0xff]
        %v248 = vld [vmem:[#allocation7 + $0x8] sm:$0xff]
        %v249 = vld [vmem:[#allocation7 + $0x10] sm:$0xff]
        %v250 = vld [vmem:[#allocation7 + $0x18] sm:$0xf]
        %v251 = vld [vmem:[#allocation7 + $0x1c] sm:$0x1]
        %v252 = vld [vmem:[#allocation7 + $0x1d] sm:$0x1]
        %v253 = vld [vmem:[#allocation7 + $0x1e] sm:$0x1]
        %vm254 = vcmask 130048
        %v256 = vsel %vm254, %v245, 0
        %v259 = vsel %vm254, %v246, 0
        %261 = vmatprep.subr.mxu0 0.0
        %262 = vmatpush1.msra.mxu0 0.0
        %263 = vmatprep.subr.mxu0 0.0
        %264 = vmatpush1.msra.mxu0 0.0
        %265 = vmatprep.subr.mxu0 0.0
        %266 = vmatpush1.msra.mxu0 0.0
        %267 = vmatprep.subr.mxu0 0.0
        %268 = vmatpush1.msra.mxu0 0.0
        %269 = vmatprep.subr.mxu0 0.0
        %270 = vmatpush1.msra.mxu0 0.0
        %271 = vmatprep.subr.mxu0 0.0
        %272 = vmatpush1.msra.mxu0 0.0
        %273 = vmatprep.subr.mxu0 0.0
        %274 = vmatpush1.msra.mxu0 0.0
        %275 = vmatprep.subr.mxu0 0.0
        %276 = vmatpush1.msra.mxu0 0.0
        %277 = vmatprep.subr.mxu0 0.0
        %278 = vmatpush1.msra.mxu0 0.0
        %279 = vmatprep.subr.mxu0 0.0
        %280 = vmatpush1.msra.mxu0 0.0
        %281 = vmatprep.subr.mxu0 0.0
        %282 = vmatpush1.msra.mxu0 0.0
        %283 = vmatprep.subr.mxu0 0.0
        %284 = vmatpush1.msra.mxu0 0.0
        %285 = vmatprep.subr.mxu0 0.0
        %286 = vmatpush1.msra.mxu0 0.0
        %287 = vmatprep.subr.mxu0 0.0
        %288 = vmatpush1.msra.mxu0 0.0
        %289 = vmatprep.subr.mxu0 0.0
        %290 = vmatpush1.msra.mxu0 %v244
        %291 = vmatprep.subr.mxu0 0.0
        %292 = vmatpush1.msra.mxu0 %v243
        %293 = vmatprep.subr.mxu0 0.0
        %294 = vmatpush2.msra.mxu0 0.0
        %295 = vmatprep.subr.mxu0 0.0
        %296 = vmatpush2.msra.mxu0 0.0
        %297 = vmatprep.subr.mxu0 0.0
        %298 = vmatpush2.msra.mxu0 0.0
        %299 = vmatprep.subr.mxu0 0.0
        %300 = vmatpush2.msra.mxu0 0.0
        %301 = vmatprep.subr.mxu0 0.0
        %302 = vmatpush2.msra.mxu0 0.0
        %303 = vmatprep.subr.mxu0 0.0
        %304 = vmatpush2.msra.mxu0 0.0
        %305 = vmatprep.subr.mxu0 0.0
        %306 = vmatpush2.msra.mxu0 0.0
        %307 = vmatprep.subr.mxu0 0.0
        %308 = vmatpush2.msra.mxu0 0.0
        %309 = vmatprep.subr.mxu0 0.0
        %310 = vmatpush2.msra.mxu0 0.0
        %311 = vmatprep.subr.mxu0 0.0
        %312 = vmatpush2.msra.mxu0 0.0
        %313 = vmatprep.subr.mxu0 0.0
        %314 = vmatpush2.msra.mxu0 0.0
        %315 = vmatprep.subr.mxu0 0.0
        %316 = vmatpush2.msra.mxu0 0.0
        %317 = vmatprep.subr.mxu0 0.0
        %318 = vmatpush2.msra.mxu0 0.0
        %319 = vmatprep.subr.mxu0 0.0
        %320 = vmatpush2.msra.mxu0 0.0
        %321 = vmatprep.subr.mxu0 0.0
        %322 = vmatpush2.msra.mxu0 0.0
        %323 = vmatprep.subr.mxu0 0.0
        %324 = vmatpush2.msra.mxu0 0.0
        %325 = vmatprep.mubr.f32.mxu0 0.0
        %326 = vmatmul.mubr.f32.gmra.mxu0 %v256
        %v327 = vpop.f32.mrf.mxu0
        %v328 = vadd.f32 0.0, %v327
        %v329 = vpop.f32.mrf.mxu0
        %330 = vmatprep.mubr.f32.mxu0 0.0
        %331 = vmatmul.mubr.f32.gmra.mxu0 %v259
        %v332 = vpop.f32.mrf.mxu0
        %v333 = vadd.f32 0.0, %v332
        %v334 = vpop.f32.mrf.mxu0
        %335 = vdwg.mxu0
        %v336 = vlaneseq
        %v337 = vshrl.u32 %v336, 7
        %v338 = vsub.s32 0, %v337
        %v339 = vrot.slane %v251, %v338
        %v341 = vsel %vm254, %v328, 0
        %v344 = vsel %vm254, %v333, 0
        %346 = vmatprep.subr.mxu0 0.0
        %347 = vmatpush1.msra.mxu0 0.0
        %348 = vmatprep.subr.mxu0 0.0
        %349 = vmatpush1.msra.mxu0 0.0
        %350 = vmatprep.subr.mxu0 0.0
        %351 = vmatpush1.msra.mxu0 0.0
        %352 = vmatprep.subr.mxu0 0.0
        %353 = vmatpush1.msra.mxu0 0.0
        %354 = vmatprep.subr.mxu0 0.0
        %355 = vmatpush1.msra.mxu0 0.0
        %356 = vmatprep.subr.mxu0 0.0
        %357 = vmatpush1.msra.mxu0 0.0
        %358 = vmatprep.subr.mxu0 0.0
        %359 = vmatpush1.msra.mxu0 0.0
        %360 = vmatprep.subr.mxu0 0.0
        %361 = vmatpush1.msra.mxu0 0.0
        %362 = vmatprep.subr.mxu0 0.0
        %363 = vmatpush1.msra.mxu0 0.0
        %364 = vmatprep.subr.mxu0 0.0
        %365 = vmatpush1.msra.mxu0 0.0
        %366 = vmatprep.subr.mxu0 0.0
        %367 = vmatpush1.msra.mxu0 0.0
        %368 = vmatprep.subr.mxu0 0.0
        %369 = vmatpush1.msra.mxu0 0.0
        %370 = vmatprep.subr.mxu0 0.0
        %371 = vmatpush1.msra.mxu0 0.0
        %372 = vmatprep.subr.mxu0 0.0
        %373 = vmatpush1.msra.mxu0 0.0
        %374 = vmatprep.subr.mxu0 0.0
        %375 = vmatpush1.msra.mxu0 %v248
        %376 = vmatprep.subr.mxu0 0.0
        %377 = vmatpush1.msra.mxu0 %v247
        %378 = vmatprep.subr.mxu0 0.0
        %379 = vmatpush2.msra.mxu0 0.0
        %380 = vmatprep.subr.mxu0 0.0
        %381 = vmatpush2.msra.mxu0 0.0
        %382 = vmatprep.subr.mxu0 0.0
        %383 = vmatpush2.msra.mxu0 0.0
        %384 = vmatprep.subr.mxu0 0.0
        %385 = vmatpush2.msra.mxu0 0.0
        %386 = vmatprep.subr.mxu0 0.0
        %387 = vmatpush2.msra.mxu0 0.0
        %388 = vmatprep.subr.mxu0 0.0
        %389 = vmatpush2.msra.mxu0 0.0
        %390 = vmatprep.subr.mxu0 0.0
        %391 = vmatpush2.msra.mxu0 0.0
        %392 = vmatprep.subr.mxu0 0.0
        %393 = vmatpush2.msra.mxu0 0.0
        %394 = vmatprep.subr.mxu0 0.0
        %395 = vmatpush2.msra.mxu0 0.0
        %396 = vmatprep.subr.mxu0 0.0
        %397 = vmatpush2.msra.mxu0 0.0
        %398 = vmatprep.subr.mxu0 0.0
        %399 = vmatpush2.msra.mxu0 0.0
        %400 = vmatprep.subr.mxu0 0.0
        %401 = vmatpush2.msra.mxu0 0.0
        %402 = vmatprep.subr.mxu0 0.0
        %403 = vmatpush2.msra.mxu0 0.0
        %404 = vmatprep.subr.mxu0 0.0
        %405 = vmatpush2.msra.mxu0 0.0
        %406 = vmatprep.subr.mxu0 0.0
        %407 = vmatpush2.msra.mxu0 0.0
        %408 = vmatprep.subr.mxu0 0.0
        %409 = vmatpush2.msra.mxu0 0.0
        %410 = vmatprep.mubr.f32.mxu0 0.0
        %411 = vmatmul.mubr.f32.gmra.mxu0 %v341
        %v412 = vpop.f32.mrf.mxu0
        %v413 = vadd.f32 %v339, %v412
        %v414 = vpop.f32.mrf.mxu0
        %415 = vmatprep.mubr.f32.mxu0 0.0
        %416 = vmatmul.mubr.f32.gmra.mxu0 %v344
        %v417 = vpop.f32.mrf.mxu0
        %v418 = vadd.f32 %v339, %v417
        %v419 = vpop.f32.mrf.mxu0
        %420 = vdwg.mxu0
        %v421 = vmax.f32 %v413, 0.0
        %v422 = vmax.f32 %v418, 0.0
        %423 = vmatprep.subr.mxu0 0.0
        %424 = vmatpush1.msra.mxu0 0.0
        %425 = vmatprep.subr.mxu0 0.0
        %426 = vmatpush1.msra.mxu0 0.0
        %427 = vmatprep.subr.mxu0 0.0
        %428 = vmatpush1.msra.mxu0 0.0
        %429 = vmatprep.subr.mxu0 0.0
        %430 = vmatpush1.msra.mxu0 0.0
        %431 = vmatprep.subr.mxu0 0.0
        %432 = vmatpush1.msra.mxu0 0.0
        %433 = vmatprep.subr.mxu0 0.0
        %434 = vmatpush1.msra.mxu0 0.0
        %435 = vmatprep.subr.mxu0 0.0
        %436 = vmatpush1.msra.mxu0 0.0
        %437 = vmatprep.subr.mxu0 0.0
        %438 = vmatpush1.msra.mxu0 0.0
        %439 = vmatprep.subr.mxu0 0.0
        %440 = vmatpush1.msra.mxu0 0.0
        %441 = vmatprep.subr.mxu0 0.0
        %442 = vmatpush1.msra.mxu0 0.0
        %443 = vmatprep.subr.mxu0 0.0
        %444 = vmatpush1.msra.mxu0 0.0
        %445 = vmatprep.subr.mxu0 0.0
        %446 = vmatpush1.msra.mxu0 0.0
        %447 = vmatprep.subr.mxu0 0.0
        %448 = vmatpush1.msra.mxu0 0.0
        %449 = vmatprep.subr.mxu0 0.0
        %450 = vmatpush1.msra.mxu0 0.0
        %451 = vmatprep.subr.mxu0 0.0
        %452 = vmatpush1.msra.mxu0 %v422
        %453 = vmatprep.subr.mxu0 0.0
        %454 = vmatpush1.msra.mxu0 %v421
        %455 = vmatprep.subr.mxu0 0.0
        %456 = vmatpush2.msra.mxu0 0.0
        %457 = vmatprep.subr.mxu0 0.0
        %458 = vmatpush2.msra.mxu0 0.0
        %459 = vmatprep.subr.mxu0 0.0
        %460 = vmatpush2.msra.mxu0 0.0
        %461 = vmatprep.subr.mxu0 0.0
        %462 = vmatpush2.msra.mxu0 0.0
        %463 = vmatprep.subr.mxu0 0.0
        %464 = vmatpush2.msra.mxu0 0.0
        %465 = vmatprep.subr.mxu0 0.0
        %466 = vmatpush2.msra.mxu0 0.0
        %467 = vmatprep.subr.mxu0 0.0
        %468 = vmatpush2.msra.mxu0 0.0
        %469 = vmatprep.subr.mxu0 0.0
        %470 = vmatpush2.msra.mxu0 0.0
        %471 = vmatprep.subr.mxu0 0.0
        %472 = vmatpush2.msra.mxu0 0.0
        %473 = vmatprep.subr.mxu0 0.0
        %474 = vmatpush2.msra.mxu0 0.0
        %475 = vmatprep.subr.mxu0 0.0
        %476 = vmatpush2.msra.mxu0 0.0
        %477 = vmatprep.subr.mxu0 0.0
        %478 = vmatpush2.msra.mxu0 0.0
        %479 = vmatprep.subr.mxu0 0.0
        %480 = vmatpush2.msra.mxu0 0.0
        %481 = vmatprep.subr.mxu0 0.0
        %482 = vmatpush2.msra.mxu0 0.0
        %483 = vmatprep.subr.mxu0 0.0
        %484 = vmatpush2.msra.mxu0 0.0
        %485 = vmatprep.subr.mxu0 0.0
        %486 = vmatpush2.msra.mxu0 0.0
        %487 = vmatprep.mubr.f32.mxu0 0.0
        %488 = vmatmul.mubr.f32.gmra.mxu0 %v256
        %v489 = vpop.f32.mrf.mxu0
        %v490 = vadd.f32 0.0, %v489
        %v491 = vpop.f32.mrf.mxu0
        %492 = vmatprep.mubr.f32.mxu0 0.0
        %493 = vmatmul.mubr.f32.gmra.mxu0 %v259
        %v494 = vpop.f32.mrf.mxu0
        %v495 = vadd.f32 0.0, %v494
        %v496 = vpop.f32.mrf.mxu0
        %497 = vdwg.mxu0
        %v498 = vlaneseq
        %v499 = vshrl.u32 %v498, 7
        %v500 = vsub.s32 0, %v499
        %v501 = vrot.slane %v252, %v500
        %vm502 = vcmask 64512
        %v504 = vsel %vm502, %v490, 0
        %v507 = vsel %vm502, %v495, 0
        %509 = vmatprep.subr.mxu0 0.0
        %510 = vmatpush1.msra.mxu0 0.0
        %511 = vmatprep.subr.mxu0 0.0
        %512 = vmatpush1.msra.mxu0 0.0
        %513 = vmatprep.subr.mxu0 0.0
        %514 = vmatpush1.msra.mxu0 0.0
        %515 = vmatprep.subr.mxu0 0.0
        %516 = vmatpush1.msra.mxu0 0.0
        %517 = vmatprep.subr.mxu0 0.0
        %518 = vmatpush1.msra.mxu0 0.0
        %519 = vmatprep.subr.mxu0 0.0
        %520 = vmatpush1.msra.mxu0 0.0
        %521 = vmatprep.subr.mxu0 0.0
        %522 = vmatpush1.msra.mxu0 0.0
        %523 = vmatprep.subr.mxu0 0.0
        %524 = vmatpush1.msra.mxu0 0.0
        %525 = vmatprep.subr.mxu0 0.0
        %526 = vmatpush1.msra.mxu0 0.0
        %527 = vmatprep.subr.mxu0 0.0
        %528 = vmatpush1.msra.mxu0 0.0
        %529 = vmatprep.subr.mxu0 0.0
        %530 = vmatpush1.msra.mxu0 0.0
        %531 = vmatprep.subr.mxu0 0.0
        %532 = vmatpush1.msra.mxu0 0.0
        %533 = vmatprep.subr.mxu0 0.0
        %534 = vmatpush1.msra.mxu0 0.0
        %535 = vmatprep.subr.mxu0 0.0
        %536 = vmatpush1.msra.mxu0 0.0
        %537 = vmatprep.subr.mxu0 0.0
        %538 = vmatpush1.msra.mxu0 0.0
        %539 = vmatprep.subr.mxu0 0.0
        %540 = vmatpush1.msra.mxu0 %v249
        %541 = vmatprep.subr.mxu0 0.0
        %542 = vmatpush2.msra.mxu0 0.0
        %543 = vmatprep.subr.mxu0 0.0
        %544 = vmatpush2.msra.mxu0 0.0
        %545 = vmatprep.subr.mxu0 0.0
        %546 = vmatpush2.msra.mxu0 0.0
        %547 = vmatprep.subr.mxu0 0.0
        %548 = vmatpush2.msra.mxu0 0.0
        %549 = vmatprep.subr.mxu0 0.0
        %550 = vmatpush2.msra.mxu0 0.0
        %551 = vmatprep.subr.mxu0 0.0
        %552 = vmatpush2.msra.mxu0 0.0
        %553 = vmatprep.subr.mxu0 0.0
        %554 = vmatpush2.msra.mxu0 0.0
        %555 = vmatprep.subr.mxu0 0.0
        %556 = vmatpush2.msra.mxu0 0.0
        %557 = vmatprep.subr.mxu0 0.0
        %558 = vmatpush2.msra.mxu0 0.0
        %559 = vmatprep.subr.mxu0 0.0
        %560 = vmatpush2.msra.mxu0 0.0
        %561 = vmatprep.subr.mxu0 0.0
        %562 = vmatpush2.msra.mxu0 0.0
        %563 = vmatprep.subr.mxu0 0.0
        %564 = vmatpush2.msra.mxu0 0.0
        %565 = vmatprep.subr.mxu0 0.0
        %566 = vmatpush2.msra.mxu0 0.0
        %567 = vmatprep.subr.mxu0 0.0
        %568 = vmatpush2.msra.mxu0 0.0
        %569 = vmatprep.subr.mxu0 0.0
        %570 = vmatpush2.msra.mxu0 0.0
        %571 = vmatprep.subr.mxu0 0.0
        %572 = vmatpush2.msra.mxu0 0.0
        %573 = vmatprep.mubr.f32.mxu0 0.0
        %574 = vmatmul.mubr.f32.gmra.mxu0 %v504
        %v575 = vpop.f32.mrf.mxu0
        %v576 = vadd.f32 %v501, %v575
        %v577 = vpop.f32.mrf.mxu0
        %578 = vmatprep.mubr.f32.mxu0 0.0
        %579 = vmatmul.mubr.f32.gmra.mxu0 %v507
        %v580 = vpop.f32.mrf.mxu0
        %v581 = vadd.f32 %v501, %v580
        %v582 = vpop.f32.mrf.mxu0
        %583 = vdwg.mxu0
        %v584 = vmax.f32 %v576, 0.0
        %v585 = vmax.f32 %v581, 0.0
        %vm586 = vcmask 31744
        %v587 = vsel %vm586, %v584, 0.0
        %v588 = vsel %vm586, %v585, 0.0
        %v589 = vadd.f32 %v587, %v588
        %v590 = vrot.slane %v589, 4
        %v591 = vadd.f32 %v589, %v590
        %v592 = vrot.slane %v591, 2
        %v593 = vadd.f32 %v591, %v592
        %v594 = vrot.slane %v593, 1
        %v595 = vadd.f32 %v593, %v594
        %v596 = vmul.f32 %v595, 0.0625
        %v598 = vsel %vm586, %v596, 0
        %vm600 = vcmask 1043456
        %v602 = vsel %vm600, %v250, 0
        %604 = vmatprep.subr.mxu0 0.0
        %605 = vmatpush1.msra.mxu0 0.0
        %606 = vmatprep.subr.mxu0 0.0
        %607 = vmatpush1.msra.mxu0 0.0
        %608 = vmatprep.subr.mxu0 0.0
        %609 = vmatpush1.msra.mxu0 0.0
        %610 = vmatprep.subr.mxu0 0.0
        %611 = vmatpush1.msra.mxu0 0.0
        %612 = vmatprep.subr.mxu0 0.0
        %613 = vmatpush1.msra.mxu0 0.0
        %614 = vmatprep.subr.mxu0 0.0
        %615 = vmatpush1.msra.mxu0 0.0
        %616 = vmatprep.subr.mxu0 0.0
        %617 = vmatpush1.msra.mxu0 0.0
        %618 = vmatprep.subr.mxu0 0.0
        %619 = vmatpush1.msra.mxu0 0.0
        %620 = vmatprep.subr.mxu0 0.0
        %621 = vmatpush1.msra.mxu0 0.0
        %622 = vmatprep.subr.mxu0 0.0
        %623 = vmatpush1.msra.mxu0 0.0
        %624 = vmatprep.subr.mxu0 0.0
        %625 = vmatpush1.msra.mxu0 0.0
        %626 = vmatprep.subr.mxu0 0.0
        %627 = vmatpush1.msra.mxu0 0.0
        %628 = vmatprep.subr.mxu0 0.0
        %629 = vmatpush1.msra.mxu0 0.0
        %630 = vmatprep.subr.mxu0 0.0
        %631 = vmatpush1.msra.mxu0 0.0
        %632 = vmatprep.subr.mxu0 0.0
        %633 = vmatpush1.msra.mxu0 0.0
        %634 = vmatprep.subr.mxu0 0.0
        %635 = vmatpush1.msra.mxu0 %v602
        %636 = vmatprep.subr.mxu0 0.0
        %637 = vmatpush2.msra.mxu0 0.0
        %638 = vmatprep.subr.mxu0 0.0
        %639 = vmatpush2.msra.mxu0 0.0
        %640 = vmatprep.subr.mxu0 0.0
        %641 = vmatpush2.msra.mxu0 0.0
        %642 = vmatprep.subr.mxu0 0.0
        %643 = vmatpush2.msra.mxu0 0.0
        %644 = vmatprep.subr.mxu0 0.0
        %645 = vmatpush2.msra.mxu0 0.0
        %646 = vmatprep.subr.mxu0 0.0
        %647 = vmatpush2.msra.mxu0 0.0
        %648 = vmatprep.subr.mxu0 0.0
        %649 = vmatpush2.msra.mxu0 0.0
        %650 = vmatprep.subr.mxu0 0.0
        %651 = vmatpush2.msra.mxu0 0.0
        %652 = vmatprep.subr.mxu0 0.0
        %653 = vmatpush2.msra.mxu0 0.0
        %654 = vmatprep.subr.mxu0 0.0
        %655 = vmatpush2.msra.mxu0 0.0
        %656 = vmatprep.subr.mxu0 0.0
        %657 = vmatpush2.msra.mxu0 0.0
        %658 = vmatprep.subr.mxu0 0.0
        %659 = vmatpush2.msra.mxu0 0.0
        %660 = vmatprep.subr.mxu0 0.0
        %661 = vmatpush2.msra.mxu0 0.0
        %662 = vmatprep.subr.mxu0 0.0
        %663 = vmatpush2.msra.mxu0 0.0
        %664 = vmatprep.subr.mxu0 0.0
        %665 = vmatpush2.msra.mxu0 0.0
        %666 = vmatprep.subr.mxu0 0.0
        %667 = vmatpush2.msra.mxu0 0.0
        %668 = vmatprep.mubr.f32.mxu0 0.0
        %669 = vmatmul.mubr.f32.gmra.mxu0 %v598
        %v670 = vpop.f32.mrf.mxu0
        %v671 = vadd.f32 %v253, %v670
        %v672 = vpop.f32.mrf.mxu0
        %673 = vdwg.mxu0
        %vm674 = vcmask 8192
        %v675 = vsel %vm674, %v671, -inf
        %676 = vmax.xlane.f32.xlu0 %v675
        %v677 = vpop.xlane.xlu0 %676
        %v678 = vsub.f32 %v671, %v677
        %v679 = vmul.f32 %v678, 1.442695
        %v680 = vpow.pop %v679
        %v681 = vsel %vm674, %v680, 0.0
        %682 = vadd.xlane.f32.xlu0 %v681
        %v683 = vpop.xlane.xlu0 %682
        %v684 = vrcp.pop %v683
        %v685 = vmul.f32 %v680, %v684
        %686 = vst [vmem:[%s242] sm:$0xff] 0.0
        %687 = vst [vmem:[%s242 + $0x8] sm:$0xff] 0.0
        %688 = vst [vmem:[%s242 + $0x10] sm:$0xff] 0.0
        %689 = vst.msk [vmem:[%s242] sm:$0xff] %vm586, %v584
        %690 = vst.msk [vmem:[%s242 + $0x8] sm:$0xff] %vm586, %v585
        %vm691 = vcmask 24576
        %692 = vst.msk [vmem:[%s242 + $0x10] sm:$0x1] %vm691, %v596
        %693 = vst.msk [vmem:[%s242 + $0x11] sm:$0x1] %vm674, %v685
        %s694 = sand.u32 %s104, 1
        %s695 = scalar_lea.sflag [#allocation4], %s694
        %s696 = sand.u32 %s104, 1
        %s697 = smul.addr %s696, 24
        %s698 = scalar_lea.vmem [#allocation8], %s697
        // Predicated region
        $region45: #{tpu_custom_call.1} parent=31 // pred_check
          %p699 = pneg %p114
        $region46: #{tpu_custom_call.1} parent=31 // pred_check_branch
          %701 = sbr.rel (%p699) target = $region48
        $region47: #{tpu_custom_call.1} parent=31 // pred_region
          %s703 = ssub.s32 384, 384
          %704 = vsyncadd %s695, %s703
          %s705 = smul.addr %s23, 3
          %s706 = smul.addr %s705, 128
          %s707 = scalar_lea.hbm %s3, %s706
          %s708 = sshll.u32 %s698, 4
          %s709 = int_to_ptr.vmem [resolvable:$true] %s708
          %714 = dma.vmem_to_hbm [thread:$0]  %s709, 384, %s707, %s695, 128, 128, 8
        $region48: #{tpu_custom_call.1} parent=31 // pred_fallthru
          _
      $region32: #{tpu_custom_call.1} parent=5 // pred_fallthru
        _
      %p715 = scmp.le.s32.totalorder 2, %s18
      // Predicated region
      $region49: #{tpu_custom_call.1} parent=5 // pred_check
        %p716 = pneg %p715
      $region50: #{tpu_custom_call.1} parent=5 // pred_check_branch
        %718 = sbr.rel (%p716) target = $region52
      $region51: #{tpu_custom_call.1} parent=5 // pred_region
        %s719 = ssub.s32 %s18, 2
        // Predicated region
        $region53: #{tpu_custom_call.1} parent=51 // pred_check
          %p720 = pneg %p120
        $region54: #{tpu_custom_call.1} parent=51 // pred_check_branch
          %722 = sbr.rel (%p720) target = $region56
        $region55: #{tpu_custom_call.1} parent=51 // pred_region
          %s723 = sand.u32 %s105, 1
          %s724 = scalar_lea.sflag [#allocation4], %s723
          %s725 = sand.u32 %s105, 1
          %s726 = smul.addr %s725, 24
          %s727 = scalar_lea.vmem [#allocation8], %s726
          %728 = dma.done %s724, 384
        $region56: #{tpu_custom_call.1} parent=51 // pred_fallthru
          _
      $region52: #{tpu_custom_call.1} parent=5 // pred_fallthru
        _
    $region6: #{tpu_custom_call.1} parent=1 // loop_footer
      %s22 = sadd.s32 1, %s18
    $region7: #{tpu_custom_call.1} parent=1 // loop_footer_branch
      %17 = sbr.rel target = $region3
    $region8: #{tpu_custom_call.1} parent=1 // loop_exit
      _
    %729 = vsyncpa [#allocation3], 1
    %s730 = scalar_lea.sflag [#allocation3], 1
    %731 = vsyncpa %s730, 1
    %732 = vsyncpa [#allocation6], 1
    %s733 = scalar_lea.sflag [#allocation6], 1
    %734 = vsyncpa %s733, 1
    %735 = vsyncpa [#allocation4], 1
    %s736 = scalar_lea.sflag [#allocation4], 1
    %737 = vsyncpa %s736, 1

</llo_original>
